<compile_context>
chip_gen: v6e
topology: v6e:2x2x1
jax: 0.10.0
libtpu: 0.0.40
codegen_flags: <defaults>
</compile_context>

<pallas_src>
import functools

import jax
import jax.numpy as jnp
from jax import lax
from jax.experimental import pallas as pl
from jax.experimental.pallas import tpu as pltpu


def _random_shift_kernel(shift_ref, x_ref, o_ref, *, pad, c, h, w):
    """Process one block of `nb` samples.

    shift_ref: (2*N,) int32 in SMEM (scalar prefetch), [2b]=x-shift, [2b+1]=y-shift.
    x_ref:     (nb, C*H, W) input block in VMEM (channels flattened into rows).
    o_ref:     (nb, C*H, W) output block in VMEM.
    """
    nb = x_ref.shape[0]
    blk = pl.program_id(0)

    def selection(shift, n):
        # 0/1 selection matrix that fuses replicate-padding + integer crop:
        #   S[t, k] = 1  iff  k == clamp(t + shift - pad, 0, n-1)
        t = lax.broadcasted_iota(jnp.int32, (n, n), 0)
        k = lax.broadcasted_iota(jnp.int32, (n, n), 1)
        src = jnp.clip(t + shift - pad, 0, n - 1)
        return (k == src).astype(jnp.float32)

    for i in range(nb):                      # static, small (nb <= ~16)
        b = blk * nb + i                     # global sample index
        sx = shift_ref[2 * b]                # width shift
        sy = shift_ref[2 * b + 1]            # height shift

        wx = selection(sx, w)                # (Wout, W)  column weights
        wy = selection(sy, h)                # (Hout, H)  row weights

        img = x_ref[i].astype(jnp.float32)   # (C*H, W)

        # One fused MXU matmul over all channels: contract the lane (W) dim.
        t1 = lax.dot_general(img, wx, (((1,), (1,)), ((), ())),
                             preferred_element_type=jnp.float32)   # (C*H, Wout)

        # Row-shift per channel (small matmuls; Wy differs per sample only).
        for ci in range(c):
            rows = slice(ci * h, (ci + 1) * h)
            out_c = jnp.dot(wy, t1[rows, :],
                            preferred_element_type=jnp.float32)    # (Hout, Wout)
            o_ref[i, rows, :] = out_c.astype(o_ref.dtype)


def _pick_block_n(n, c, h, w, itemsize):
    """Samples per grid step: double-buffered in+out tiles <= ~8 MiB, grid >= 2 if possible."""
    per_sample = 2 * 2 * c * h * w * itemsize          # (in + out) x double buffering
    budget = 8 * 1024 * 1024
    max_nb = max(1, budget // per_sample)
    divisors = [d for d in range(1, n + 1) if n % d == 0 and d <= max_nb]
    multi = [d for d in divisors if n // d >= 2]       # keep both v7x TCs busy
    return max(multi) if multi else max(divisors)


def random_shifts_aug(x, shift, pad):
    """x: (N, C, H, W) float.  shift: (N, 2) int32 in [0, 2*pad] ((x, y) order).

    Returns (N, C, H, W), identical to RandomShiftsAug.forward given the same shifts.
    """
    n, c, h, w = x.shape
    assert h == w
    nb = _pick_block_n(n, c, h, w, jnp.dtype(x.dtype).itemsize)

    # Free bitcast views: flatten channels into rows so the kernel can fuse them
    # into one matmul; flatten the shift table to 1-D to avoid 2-D SMEM padding.
    x_flat = x.reshape(n, c * h, w)
    shift_flat = shift.astype(jnp.int32).reshape(-1)

    kernel = functools.partial(_random_shift_kernel, pad=pad, c=c, h=h, w=w)

    out_flat = pl.pallas_call(
        kernel,
        out_shape=jax.ShapeDtypeStruct((n, c * h, w), x.dtype),
        grid_spec=pltpu.PrefetchScalarGridSpec(
            num_scalar_prefetch=1,                       # shift table -> SMEM
            grid=(n // nb,),
            in_specs=[pl.BlockSpec((nb, c * h, w), lambda b, s: (b, 0, 0))],
            out_specs=pl.BlockSpec((nb, c * h, w), lambda b, s: (b, 0, 0)),
        ),
        compiler_params=pltpu.CompilerParams(
            dimension_semantics=("parallel",),
            vmem_limit_bytes=32 * 1024 * 1024,
        ),
    )(shift_flat, x_flat)

    return out_flat.reshape(n, c, h, w)


if __name__ == "__main__":
    PAD = 4
    N, C, H, W = 2, 4, 16, 16

    key = jax.random.PRNGKey(0)
    k_x, k_s = jax.random.split(key)
    x = jax.random.normal(k_x, (N, C, H, W), dtype=jnp.float32)
    # torch.randint(0, 2*pad+1, (n,1,1,2)) equivalent; RNG sampled wrapper-side.
    shift = jax.random.randint(k_s, (N, 2), 0, 2 * PAD + 1, dtype=jnp.int32)

    out = random_shifts_aug(x, shift, PAD)
    out = jax.block_until_ready(out)

    # Reference: replicate pad + integer crop (exactly what the sampling grid does).
    x_pad = jnp.pad(x, ((0, 0), (0, 0), (PAD, PAD), (PAD, PAD)), mode="edge")
    ref = jnp.stack([
        x_pad[b, :, int(shift[b, 1]):int(shift[b, 1]) + H,
              int(shift[b, 0]):int(shift[b, 0]) + W]
        for b in range(N)
    ])
    assert out.shape == x.shape and out.dtype == x.dtype
    assert float(jnp.max(jnp.abs(out - ref))) < 1e-5

    print("KERNEL_OK")
</pallas_src>

<mosaic_0001>
module attributes {stable_mosaic.version = 11 : i64} {
  func.func @_random_shift_kernel(%arg0: i32, %arg1: memref<4xi32, #tpu.memory_space<smem>>, %arg2: memref<1x64x16xf32, #tpu.memory_space<vmem>>, %arg3: memref<1x64x16xf32, #tpu.memory_space<vmem>>) attributes {dimension_semantics = [#tpu.dimension_semantics<parallel>], iteration_bounds = array<i64: 2>, scalar_prefetch = 1 : i64, scratch_operands = 0 : i64, tpu.core_type = #tpu.core_type<tc>, window_params = [{transform_indices = @transform_0, window_bounds = array<i64: 1, 64, 16>}, {transform_indices = @transform_1, window_bounds = array<i64: 1, 64, 16>}]} {
    %c1_i32 = arith.constant 1 : i32
    %0 = arith.muli %arg0, %c1_i32 : i32
    %c0_i32 = arith.constant 0 : i32
    %1 = arith.addi %0, %c0_i32 : i32
    %c2_i32 = arith.constant 2 : i32
    %2 = arith.muli %c2_i32, %1 : i32
    %3 = arith.index_cast %2 : i32 to index
    %4 = memref.load %arg1[%3] : memref<4xi32, #tpu.memory_space<smem>>
    %c2_i32_0 = arith.constant 2 : i32
    %5 = arith.muli %c2_i32_0, %1 : i32
    %c1_i32_1 = arith.constant 1 : i32
    %6 = arith.addi %5, %c1_i32_1 : i32
    %7 = arith.index_cast %6 : i32 to index
    %8 = memref.load %arg1[%7] : memref<4xi32, #tpu.memory_space<smem>>
    %9 = tpu.iota {dimensions = array<i32: 0>} : vector<16x16xi32>
    %10 = tpu.iota {dimensions = array<i32: 1>} : vector<16x16xi32>
    %11 = vector.broadcast %4 : i32 to vector<16x16xi32>
    %12 = arith.addi %9, %11 : vector<16x16xi32>
    %c4_i32 = arith.constant 4 : i32
    %13 = vector.broadcast %c4_i32 : i32 to vector<16x16xi32>
    %14 = arith.subi %12, %13 : vector<16x16xi32>
    %c0_i32_2 = arith.constant 0 : i32
    %c15_i32 = arith.constant 15 : i32
    %15 = vector.broadcast %c0_i32_2 : i32 to vector<16x16xi32>
    %16 = arith.maxsi %15, %14 : vector<16x16xi32>
    %17 = vector.broadcast %c15_i32 : i32 to vector<16x16xi32>
    %18 = arith.minsi %17, %16 : vector<16x16xi32>
    %19 = arith.cmpi eq, %10, %18 : vector<16x16xi32>
    %20 = arith.extui %19 : vector<16x16xi1> to vector<16x16xi32>
    %21 = arith.sitofp %20 : vector<16x16xi32> to vector<16x16xf32>
    %22 = tpu.iota {dimensions = array<i32: 0>} : vector<16x16xi32>
    %23 = tpu.iota {dimensions = array<i32: 1>} : vector<16x16xi32>
    %24 = vector.broadcast %8 : i32 to vector<16x16xi32>
    %25 = arith.addi %22, %24 : vector<16x16xi32>
    %c4_i32_3 = arith.constant 4 : i32
    %26 = vector.broadcast %c4_i32_3 : i32 to vector<16x16xi32>
    %27 = arith.subi %25, %26 : vector<16x16xi32>
    %c0_i32_4 = arith.constant 0 : i32
    %c15_i32_5 = arith.constant 15 : i32
    %28 = vector.broadcast %c0_i32_4 : i32 to vector<16x16xi32>
    %29 = arith.maxsi %28, %27 : vector<16x16xi32>
    %30 = vector.broadcast %c15_i32_5 : i32 to vector<16x16xi32>
    %31 = arith.minsi %30, %29 : vector<16x16xi32>
    %32 = arith.cmpi eq, %23, %31 : vector<16x16xi32>
    %33 = arith.extui %32 : vector<16x16xi1> to vector<16x16xi32>
    %34 = arith.sitofp %33 : vector<16x16xi32> to vector<16x16xf32>
    %c0 = arith.constant 0 : index
    %c0_6 = arith.constant 0 : index
    %c0_7 = arith.constant 0 : index
    %35 = vector.load %arg2[%c0, %c0_6, %c0_7] : memref<1x64x16xf32, #tpu.memory_space<vmem>>, vector<1x64x16xf32>
    %36 = vector.shape_cast %35 : vector<1x64x16xf32> to vector<64x16xf32>
    %cst = arith.constant dense<0.000000e+00> : vector<64x16xf32>
    %37 = tpu.matmul %36, %21, %cst {dimension_numbers = #tpu.dot_dimension_numbers<[1], [1], [0], [0], [0, 0, 1, 0], [], []>} : vector<64x16xf32>, vector<16x16xf32>, vector<64x16xf32> -> vector<64x16xf32>
    %38 = vector.extract_strided_slice %37 {offsets = [0, 0], sizes = [16, 16], strides = [1, 1]} : vector<64x16xf32> to vector<16x16xf32>
    %cst_8 = arith.constant dense<0.000000e+00> : vector<16x16xf32>
    %39 = tpu.matmul %34, %38, %cst_8 {dimension_numbers = #tpu.dot_dimension_numbers<[1], [0], [0], [1], [0, 0, 1, 1], [], []>} : vector<16x16xf32>, vector<16x16xf32>, vector<16x16xf32> -> vector<16x16xf32>
    %c0_9 = arith.constant 0 : index
    %c0_10 = arith.constant 0 : index
    %c0_11 = arith.constant 0 : index
    %40 = vector.load %arg3[%c0_9, %c0_10, %c0_11] : memref<1x64x16xf32, #tpu.memory_space<vmem>>, vector<1x16x16xf32>
    %41 = vector.shape_cast %40 : vector<1x16x16xf32> to vector<16x16xf32>
    %42 = vector.shape_cast %39 : vector<16x16xf32> to vector<1x16x16xf32>
    tpu.vector_store %arg3[%c0_9, %c0_10, %c0_11], %42 {strides = array<i32>} : memref<1x64x16xf32, #tpu.memory_space<vmem>>, vector<1x16x16xf32>,
    %43 = vector.extract_strided_slice %37 {offsets = [16, 0], sizes = [16, 16], strides = [1, 1]} : vector<64x16xf32> to vector<16x16xf32>
    %cst_12 = arith.constant dense<0.000000e+00> : vector<16x16xf32>
    %44 = tpu.matmul %34, %43, %cst_12 {dimension_numbers = #tpu.dot_dimension_numbers<[1], [0], [0], [1], [0, 0, 1, 1], [], []>} : vector<16x16xf32>, vector<16x16xf32>, vector<16x16xf32> -> vector<16x16xf32>
    %c0_13 = arith.constant 0 : index
    %c16 = arith.constant 16 : index
    %c0_14 = arith.constant 0 : index
    %45 = vector.load %arg3[%c0_13, %c16, %c0_14] : memref<1x64x16xf32, #tpu.memory_space<vmem>>, vector<1x16x16xf32>
    %46 = vector.shape_cast %45 : vector<1x16x16xf32> to vector<16x16xf32>
    %47 = vector.shape_cast %44 : vector<16x16xf32> to vector<1x16x16xf32>
    tpu.vector_store %arg3[%c0_13, %c16, %c0_14], %47 {strides = array<i32>} : memref<1x64x16xf32, #tpu.memory_space<vmem>>, vector<1x16x16xf32>,
    %48 = vector.extract_strided_slice %37 {offsets = [32, 0], sizes = [16, 16], strides = [1, 1]} : vector<64x16xf32> to vector<16x16xf32>
    %cst_15 = arith.constant dense<0.000000e+00> : vector<16x16xf32>
    %49 = tpu.matmul %34, %48, %cst_15 {dimension_numbers = #tpu.dot_dimension_numbers<[1], [0], [0], [1], [0, 0, 1, 1], [], []>} : vector<16x16xf32>, vector<16x16xf32>, vector<16x16xf32> -> vector<16x16xf32>
    %c0_16 = arith.constant 0 : index
    %c32 = arith.constant 32 : index
    %c0_17 = arith.constant 0 : index
    %50 = vector.load %arg3[%c0_16, %c32, %c0_17] : memref<1x64x16xf32, #tpu.memory_space<vmem>>, vector<1x16x16xf32>
    %51 = vector.shape_cast %50 : vector<1x16x16xf32> to vector<16x16xf32>
    %52 = vector.shape_cast %49 : vector<16x16xf32> to vector<1x16x16xf32>
    tpu.vector_store %arg3[%c0_16, %c32, %c0_17], %52 {strides = array<i32>} : memref<1x64x16xf32, #tpu.memory_space<vmem>>, vector<1x16x16xf32>,
    %53 = vector.extract_strided_slice %37 {offsets = [48, 0], sizes = [16, 16], strides = [1, 1]} : vector<64x16xf32> to vector<16x16xf32>
    %cst_18 = arith.constant dense<0.000000e+00> : vector<16x16xf32>
    %54 = tpu.matmul %34, %53, %cst_18 {dimension_numbers = #tpu.dot_dimension_numbers<[1], [0], [0], [1], [0, 0, 1, 1], [], []>} : vector<16x16xf32>, vector<16x16xf32>, vector<16x16xf32> -> vector<16x16xf32>
    %c0_19 = arith.constant 0 : index
    %c48 = arith.constant 48 : index
    %c0_20 = arith.constant 0 : index
    %55 = vector.load %arg3[%c0_19, %c48, %c0_20] : memref<1x64x16xf32, #tpu.memory_space<vmem>>, vector<1x16x16xf32>
    %56 = vector.shape_cast %55 : vector<1x16x16xf32> to vector<16x16xf32>
    %57 = vector.shape_cast %54 : vector<16x16xf32> to vector<1x16x16xf32>
    tpu.vector_store %arg3[%c0_19, %c48, %c0_20], %57 {strides = array<i32>} : memref<1x64x16xf32, #tpu.memory_space<vmem>>, vector<1x16x16xf32>,
    return
  }
  func.func @transform_0(%arg0: i32, %arg1: memref<4xi32, #tpu.memory_space<smem>>) -> (i32, i32, i32) {
    %c0_i32 = arith.constant 0 : i32
    %c0_i32_0 = arith.constant 0 : i32
    %c0_i32_1 = arith.constant 0 : i32
    return %arg0, %c0_i32, %c0_i32_0 : i32, i32, i32
  }
  func.func @transform_1(%arg0: i32, %arg1: memref<4xi32, #tpu.memory_space<smem>>) -> (i32, i32, i32) {
    %c0_i32 = arith.constant 0 : i32
    %c0_i32_0 = arith.constant 0 : i32
    %c0_i32_1 = arith.constant 0 : i32
    return %arg0, %c0_i32, %c0_i32_0 : i32, i32, i32
  }
}

</mosaic_0001>

<llo_original>
// kernel: tpu_custom_call.1
$region0: #{tpu_custom_call.1}
  #allocation0 [shape = 'u32[]', space=smem, size = 0x4, offset = 0x4, fixed_abs, tag = 'smem constant byte address 0x4 - core index']
  #allocation1 [shape = 'u32[144,128]{1,0:T(1,128)}', space=vmem, size = 0x12000, scoped, tag = 'internal scratch']
  #allocation2 [shape = 's32[1]{0}', space=sflag, size = 0x4, scoped, tag = 'scoped memory for tpu_custom_call.1']
  #allocation3 [shape = 'u8[512]{0}', space=smem, size = 0x200, scoped, tag = 'prefetched SMEM operand 0']
  %s0 = inlined_call_operand.vmem [shape: s32[4], index: 0, kind: input, shape index: {}]
  %s1 = inlined_call_operand.vmem [shape: f32[2,64,16], index: 1, kind: input, shape index: {}]
  %s2 = inlined_call_operand.vmem [shape: f32[2,64,16], index: 2, kind: output, shape index: {}]
  %s3 = sld [smem:[#allocation0]]
  $region37: #{tpu_custom_call.1} parent=0
    _
  %s5 = ssub.s32 1, %s3
  %s6 = scalar_select 0, %s5, %s3
  %s7 = sshll.u32 %s0, 4
  %s8 = int_to_ptr.vmem [resolvable:$true] %s7
  %10 = dma.vmem_to_smem %s8, 16, [#allocation3], [#allocation2]
  %11 = dma.done [#allocation2], 16
  %12 = sfence
  loop: start=0, step=1, limit=4
  $region2: #{tpu_custom_call.1} parent=0 // loop_pre_header
    _
  $region3: #{tpu_custom_call.1} parent=0 // loop_header
    %s14 = sphi 0, %s18
    %p15 = scmp.ge.s32.totalorder %s14, 4
    %s24 = sphi 0, %s26
    %s27 = sphi 0, %s24
    %s28 = sphi 0, %s27
    %s44 = sphi 0, %s28
    %s50 = sphi 0, %s52
    %s53 = sphi 0, %s50
    %s54 = sphi 0, %s53
    %s70 = sphi 0, %s54
  $region4: #{tpu_custom_call.1} parent=0 // loop_header_branch
    %17 = sbr.rel (%p15) target = $region8
  $region5: #{tpu_custom_call.1} parent=0 // loop_body
    %s19 = ssub.s32 %s14, 1
    %s20 = ssub.s32 %s14, 2
    %s21 = sadd.s32 %s14, 1
    %s22 = ssub.s32 %s14, %s21
    %p23 = scmp.eq.s32.totalorder %s22, 0
    %s25 = sadd.s32 %s24, 1
    %s26 = scalar_select %p23, %s24, %s25
    %p29 = pneg %p23
    %p30 = scmp.eq.s32.totalorder %s14, 1
    %p31 = por %p29, %p30
    %p32 = scmp.ne.s32.totalorder %s24, %s27
    %p33 = scmp.eq.s32.totalorder %s14, 0
    %p34 = por %p32, %p33
    %p35 = scmp.ne.s32.totalorder %s24, %s27
    %p36 = scmp.eq.s32.totalorder %s19, 1
    %p37 = por %p35, %p36
    %p38 = scmp.ne.s32.totalorder %s27, %s28
    %p39 = scmp.eq.s32.totalorder %s19, 0
    %p40 = por %p38, %p39
    %p41 = scmp.ne.s32.totalorder %s27, %s28
    %p42 = scmp.eq.s32.totalorder %s20, 1
    %p43 = por %p41, %p42
    %p45 = scmp.ne.s32.totalorder %s28, %s44
    %p46 = scmp.eq.s32.totalorder %s20, 0
    %p47 = por %p45, %p46
    %s48 = ssub.s32 %s14, %s21
    %p49 = scmp.eq.s32.totalorder %s48, 0
    %s51 = sadd.s32 %s50, 1
    %s52 = scalar_select %p49, %s50, %s51
    %p55 = pneg %p49
    %p56 = scmp.eq.s32.totalorder %s14, 1
    %p57 = por %p55, %p56
    %p58 = scmp.ne.s32.totalorder %s50, %s53
    %p59 = scmp.eq.s32.totalorder %s14, 0
    %p60 = por %p58, %p59
    %p61 = scmp.ne.s32.totalorder %s50, %s53
    %p62 = scmp.eq.s32.totalorder %s19, 1
    %p63 = por %p61, %p62
    %p64 = scmp.ne.s32.totalorder %s53, %s54
    %p65 = scmp.eq.s32.totalorder %s19, 0
    %p66 = por %p64, %p65
    %p67 = scmp.ne.s32.totalorder %s53, %s54
    %p68 = scmp.eq.s32.totalorder %s20, 1
    %p69 = por %p67, %p68
    %p71 = scmp.ne.s32.totalorder %s54, %s70
    %p72 = scmp.eq.s32.totalorder %s20, 0
    %p73 = por %p71, %p72
    %p74 = scmp.le.s32.totalorder 1, %s14
    %p75 = scmp.lt.s32.totalorder %s14, 3
    %p76 = pnand %p74, %p75
    %p77 = pneg %p76
    // Predicated region
    $region9: #{tpu_custom_call.1} parent=5 // pred_check
      _
    $region10: #{tpu_custom_call.1} parent=5 // pred_check_branch
      %79 = sbr.rel (%p76) target = $region12
    $region11: #{tpu_custom_call.1} parent=5 // pred_region
      %s80 = ssub.s32 %s14, 1
    $region12: #{tpu_custom_call.1} parent=5 // pred_fallthru
      _
    %p81 = scmp.lt.s32.totalorder %s14, 2
    // Predicated region
    $region13: #{tpu_custom_call.1} parent=5 // pred_check
      %p82 = pneg %p81
    $region14: #{tpu_custom_call.1} parent=5 // pred_check_branch
      %84 = sbr.rel (%p82) target = $region16
    $region15: #{tpu_custom_call.1} parent=5 // pred_region
      // Predicated region
      $region17: #{tpu_custom_call.1} parent=15 // pred_check
        %p85 = pneg %p34
      $region18: #{tpu_custom_call.1} parent=15 // pred_check_branch
        %87 = sbr.rel (%p85) target = $region20
      $region19: #{tpu_custom_call.1} parent=15 // pred_region
        %p88 = scmp.lt.s32.totalorder %s14, 1
        %s89 = scalar_select %p88, %s14, 1
        %s90 = smul.addr %s89, 8
        %s91 = smul.addr %s90, 8
        %s92 = scalar_lea.vmem %s1, %s91
      $region20: #{tpu_custom_call.1} parent=15 // pred_fallthru
        _
    $region16: #{tpu_custom_call.1} parent=5 // pred_fallthru
      _
    %p93 = scmp.le.s32.totalorder 1, %s14
    %p94 = scmp.lt.s32.totalorder %s14, 3
    %p95 = pnand %p93, %p94
    %p96 = pneg %p95
    // Predicated region
    $region21: #{tpu_custom_call.1} parent=5 // pred_check
      _
    $region22: #{tpu_custom_call.1} parent=5 // pred_check_branch
      %98 = sbr.rel (%p95) target = $region24
    $region23: #{tpu_custom_call.1} parent=5 // pred_region
      %s99 = ssub.s32 %s14, 1
      %p100 = scmp.lt.s32.totalorder %s19, 1
      %s101 = scalar_select %p100, %s19, 1
      %s102 = smul.addr %s101, 8
      %s103 = smul.addr %s102, 8
      %s104 = scalar_lea.vmem %s1, %s103
      %p105 = pneg %p40
      %p106 = pneg %p37
      %p107 = pneg %p66
      %p108 = pneg %p63
      %p109 = scmp.lt.s32.totalorder %s19, 1
      %s110 = scalar_select %p109, %s19, 1
      %s111 = smul.addr %s110, 8
      %s112 = smul.addr %s111, 8
      %s113 = scalar_lea.vmem %s2, %s112
      %p114 = scmp.lt.s32.totalorder %s19, 1
      %s115 = scalar_select %p114, %s19, 1
      %s116 = smul.addr %s115, 8
      %s117 = smul.addr %s116, 8
      %s118 = scalar_lea.vmem %s1, %s117
      %p119 = scmp.lt.s32.totalorder %s19, 1
      %s120 = scalar_select %p119, %s19, 1
      %s121 = smul.addr %s120, 8
      %s122 = smul.addr %s121, 8
      %s123 = scalar_lea.vmem %s2, %s122
      %s124 = smul.u32 %s19, 2
      %s125 = sld [smem:[#allocation3 + %s124]]
      %s126 = sadd.s32 %s124, 1
      %s127 = sld [smem:[#allocation3 + %s126]]
      %v128 = vlaneseq
      %v129 = vshrl.u32 %v128, 7
      %v130 = vadd.s32 %v129, 8
      %v131 = vlaneseq
      %v132 = vand.u32 %v131, 127
      %v133 = vstv %s125
      %v134 = vadd.s32 %v129, %v133
      %v135 = vadd.s32 %v130, %v133
      %v136 = vsub.s32 %v134, 4
      %v137 = vsub.s32 %v135, 4
      %vm138 = vcmp.gt.s32.totalorder %v136, 0
      %v139 = vsel %vm138, %v136, 0
      %vm140 = vcmp.gt.s32.totalorder %v137, 0
      %v141 = vsel %vm140, %v137, 0
      %vm142 = vcmp.lt.s32.totalorder %v139, 15
      %v143 = vsel %vm142, %v139, 15
      %vm144 = vcmp.lt.s32.totalorder %v141, 15
      %v145 = vsel %vm144, %v141, 15
      %vm146 = vcmp.eq.s32.totalorder %v132, %v143
      %vm147 = vcmp.eq.s32.totalorder %v132, %v145
      %v148 = vsel %vm146, 1, 0
      %v149 = vsel %vm147, 1, 0
      %v150 = vcvt.s32.f32 %v148
      %v151 = vcvt.s32.f32 %v149
      %v152 = vstv %s127
      %v153 = vadd.s32 %v129, %v152
      %v154 = vadd.s32 %v130, %v152
      %v155 = vsub.s32 %v153, 4
      %v156 = vsub.s32 %v154, 4
      %vm157 = vcmp.gt.s32.totalorder %v155, 0
      %v158 = vsel %vm157, %v155, 0
      %vm159 = vcmp.gt.s32.totalorder %v156, 0
      %v160 = vsel %vm159, %v156, 0
      %vm161 = vcmp.lt.s32.totalorder %v158, 15
      %v162 = vsel %vm161, %v158, 15
      %vm163 = vcmp.lt.s32.totalorder %v160, 15
      %v164 = vsel %vm163, %v160, 15
      %vm165 = vcmp.eq.s32.totalorder %v132, %v162
      %vm166 = vcmp.eq.s32.totalorder %v132, %v164
      %v167 = vsel %vm165, 1, 0
      %v168 = vsel %vm166, 1, 0
      %v169 = vcvt.s32.f32 %v167
      %v170 = vcvt.s32.f32 %v168
      %v171 = vld [vmem:[%s118] sm:$0xff]
      %v172 = vld [vmem:[%s118 + $0x8] sm:$0xff]
      %v173 = vld [vmem:[%s118 + $0x10] sm:$0xff]
      %v174 = vld [vmem:[%s118 + $0x18] sm:$0xff]
      %v175 = vld [vmem:[%s118 + $0x20] sm:$0xff]
      %v176 = vld [vmem:[%s118 + $0x28] sm:$0xff]
      %v177 = vld [vmem:[%s118 + $0x30] sm:$0xff]
      %v178 = vld [vmem:[%s118 + $0x38] sm:$0xff]
      %vm179 = vcmask 130048
      %v181 = vsel %vm179, %v171, 0
      %v184 = vsel %vm179, %v172, 0
      %v187 = vsel %vm179, %v173, 0
      %v190 = vsel %vm179, %v174, 0
      %v193 = vsel %vm179, %v175, 0
      %v196 = vsel %vm179, %v176, 0
      %v199 = vsel %vm179, %v177, 0
      %v202 = vsel %vm179, %v178, 0
      %v205 = vsel %vm179, %v150, 0
      %v208 = vsel %vm179, %v151, 0
      %210 = vmatprep.subr.mxu0 0.0
      %211 = vmatpush1.xpose.msra.mxu0 0.0
      %212 = vmatprep.subr.mxu0 0.0
      %213 = vmatpush1.xpose.msra.mxu0 0.0
      %214 = vmatprep.subr.mxu0 0.0
      %215 = vmatpush1.xpose.msra.mxu0 0.0
      %216 = vmatprep.subr.mxu0 0.0
      %217 = vmatpush1.xpose.msra.mxu0 0.0
      %218 = vmatprep.subr.mxu0 0.0
      %219 = vmatpush1.xpose.msra.mxu0 0.0
      %220 = vmatprep.subr.mxu0 0.0
      %221 = vmatpush1.xpose.msra.mxu0 0.0
      %222 = vmatprep.subr.mxu0 0.0
      %223 = vmatpush1.xpose.msra.mxu0 0.0
      %224 = vmatprep.subr.mxu0 0.0
      %225 = vmatpush1.xpose.msra.mxu0 0.0
      %226 = vmatprep.subr.mxu0 0.0
      %227 = vmatpush1.xpose.msra.mxu0 0.0
      %228 = vmatprep.subr.mxu0 0.0
      %229 = vmatpush1.xpose.msra.mxu0 0.0
      %230 = vmatprep.subr.mxu0 0.0
      %231 = vmatpush1.xpose.msra.mxu0 0.0
      %232 = vmatprep.subr.mxu0 0.0
      %233 = vmatpush1.xpose.msra.mxu0 0.0
      %234 = vmatprep.subr.mxu0 0.0
      %235 = vmatpush1.xpose.msra.mxu0 0.0
      %236 = vmatprep.subr.mxu0 0.0
      %237 = vmatpush1.xpose.msra.mxu0 0.0
      %238 = vmatprep.subr.mxu0 0.0
      %239 = vmatpush1.xpose.msra.mxu0 %v208
      %240 = vmatprep.subr.mxu0 0.0
      %241 = vmatpush1.xpose.msra.mxu0 %v205
      %242 = vmatprep.subr.mxu0 0.0
      %243 = vmatpush2.xpose.msra.mxu0 0.0
      %244 = vmatprep.subr.mxu0 0.0
      %245 = vmatpush2.xpose.msra.mxu0 0.0
      %246 = vmatprep.subr.mxu0 0.0
      %247 = vmatpush2.xpose.msra.mxu0 0.0
      %248 = vmatprep.subr.mxu0 0.0
      %249 = vmatpush2.xpose.msra.mxu0 0.0
      %250 = vmatprep.subr.mxu0 0.0
      %251 = vmatpush2.xpose.msra.mxu0 0.0
      %252 = vmatprep.subr.mxu0 0.0
      %253 = vmatpush2.xpose.msra.mxu0 0.0
      %254 = vmatprep.subr.mxu0 0.0
      %255 = vmatpush2.xpose.msra.mxu0 0.0
      %256 = vmatprep.subr.mxu0 0.0
      %257 = vmatpush2.xpose.msra.mxu0 0.0
      %258 = vmatprep.subr.mxu0 0.0
      %259 = vmatpush2.xpose.msra.mxu0 0.0
      %260 = vmatprep.subr.mxu0 0.0
      %261 = vmatpush2.xpose.msra.mxu0 0.0
      %262 = vmatprep.subr.mxu0 0.0
      %263 = vmatpush2.xpose.msra.mxu0 0.0
      %264 = vmatprep.subr.mxu0 0.0
      %265 = vmatpush2.xpose.msra.mxu0 0.0
      %266 = vmatprep.subr.mxu0 0.0
      %267 = vmatpush2.xpose.msra.mxu0 0.0
      %268 = vmatprep.subr.mxu0 0.0
      %269 = vmatpush2.xpose.msra.mxu0 0.0
      %270 = vmatprep.subr.mxu0 0.0
      %271 = vmatpush2.xpose.msra.mxu0 0.0
      %272 = vmatprep.subr.mxu0 0.0
      %273 = vmatpush2.xpose.msra.mxu0 0.0
      %274 = vmatprep.mubr.f32.mxu0 0.0
      %275 = vmatmul.mubr.f32.gmra.mxu0 %v181
      %v276 = vpop.f32.mrf.mxu0
      %v277 = vadd.f32 0.0, %v276
      %v278 = vpop.f32.mrf.mxu0
      %279 = vmatprep.mubr.f32.mxu0 0.0
      %280 = vmatmul.mubr.f32.gmra.mxu0 %v184
      %v281 = vpop.f32.mrf.mxu0
      %v282 = vadd.f32 0.0, %v281
      %v283 = vpop.f32.mrf.mxu0
      %284 = vmatprep.mubr.f32.mxu0 0.0
      %285 = vmatmul.mubr.f32.gmra.mxu0 %v187
      %v286 = vpop.f32.mrf.mxu0
      %v287 = vadd.f32 0.0, %v286
      %v288 = vpop.f32.mrf.mxu0
      %289 = vmatprep.mubr.f32.mxu0 0.0
      %290 = vmatmul.mubr.f32.gmra.mxu0 %v190
      %v291 = vpop.f32.mrf.mxu0
      %v292 = vadd.f32 0.0, %v291
      %v293 = vpop.f32.mrf.mxu0
      %294 = vmatprep.mubr.f32.mxu0 0.0
      %295 = vmatmul.mubr.f32.gmra.mxu0 %v193
      %v296 = vpop.f32.mrf.mxu0
      %v297 = vadd.f32 0.0, %v296
      %v298 = vpop.f32.mrf.mxu0
      %299 = vmatprep.mubr.f32.mxu0 0.0
      %300 = vmatmul.mubr.f32.gmra.mxu0 %v196
      %v301 = vpop.f32.mrf.mxu0
      %v302 = vadd.f32 0.0, %v301
      %v303 = vpop.f32.mrf.mxu0
      %304 = vmatprep.mubr.f32.mxu0 0.0
      %305 = vmatmul.mubr.f32.gmra.mxu0 %v199
      %v306 = vpop.f32.mrf.mxu0
      %v307 = vadd.f32 0.0, %v306
      %v308 = vpop.f32.mrf.mxu0
      %309 = vmatprep.mubr.f32.mxu0 0.0
      %310 = vmatmul.mubr.f32.gmra.mxu0 %v202
      %v311 = vpop.f32.mrf.mxu0
      %v312 = vadd.f32 0.0, %v311
      %v313 = vpop.f32.mrf.mxu0
      %314 = vdwg.mxu0
      %v316 = vsel %vm179, %v169, 0
      %v319 = vsel %vm179, %v170, 0
      %321 = vmatprep.subr.mxu0 0.0
      %322 = vmatpush1.msra.mxu0 0.0
      %323 = vmatprep.subr.mxu0 0.0
      %324 = vmatpush1.msra.mxu0 0.0
      %325 = vmatprep.subr.mxu0 0.0
      %326 = vmatpush1.msra.mxu0 0.0
      %327 = vmatprep.subr.mxu0 0.0
      %328 = vmatpush1.msra.mxu0 0.0
      %329 = vmatprep.subr.mxu0 0.0
      %330 = vmatpush1.msra.mxu0 0.0
      %331 = vmatprep.subr.mxu0 0.0
      %332 = vmatpush1.msra.mxu0 0.0
      %333 = vmatprep.subr.mxu0 0.0
      %334 = vmatpush1.msra.mxu0 0.0
      %335 = vmatprep.subr.mxu0 0.0
      %336 = vmatpush1.msra.mxu0 0.0
      %337 = vmatprep.subr.mxu0 0.0
      %338 = vmatpush1.msra.mxu0 0.0
      %339 = vmatprep.subr.mxu0 0.0
      %340 = vmatpush1.msra.mxu0 0.0
      %341 = vmatprep.subr.mxu0 0.0
      %342 = vmatpush1.msra.mxu0 0.0
      %343 = vmatprep.subr.mxu0 0.0
      %344 = vmatpush1.msra.mxu0 0.0
      %345 = vmatprep.subr.mxu0 0.0
      %346 = vmatpush1.msra.mxu0 0.0
      %347 = vmatprep.subr.mxu0 0.0
      %348 = vmatpush1.msra.mxu0 0.0
      %349 = vmatprep.subr.mxu0 0.0
      %350 = vmatpush1.msra.mxu0 %v282
      %351 = vmatprep.subr.mxu0 0.0
      %352 = vmatpush1.msra.mxu0 %v277
      %353 = vmatprep.subr.mxu0 0.0
      %354 = vmatpush2.msra.mxu0 0.0
      %355 = vmatprep.subr.mxu0 0.0
      %356 = vmatpush2.msra.mxu0 0.0
      %357 = vmatprep.subr.mxu0 0.0
      %358 = vmatpush2.msra.mxu0 0.0
      %359 = vmatprep.subr.mxu0 0.0
      %360 = vmatpush2.msra.mxu0 0.0
      %361 = vmatprep.subr.mxu0 0.0
      %362 = vmatpush2.msra.mxu0 0.0
      %363 = vmatprep.subr.mxu0 0.0
      %364 = vmatpush2.msra.mxu0 0.0
      %365 = vmatprep.subr.mxu0 0.0
      %366 = vmatpush2.msra.mxu0 0.0
      %367 = vmatprep.subr.mxu0 0.0
      %368 = vmatpush2.msra.mxu0 0.0
      %369 = vmatprep.subr.mxu0 0.0
      %370 = vmatpush2.msra.mxu0 0.0
      %371 = vmatprep.subr.mxu0 0.0
      %372 = vmatpush2.msra.mxu0 0.0
      %373 = vmatprep.subr.mxu0 0.0
      %374 = vmatpush2.msra.mxu0 0.0
      %375 = vmatprep.subr.mxu0 0.0
      %376 = vmatpush2.msra.mxu0 0.0
      %377 = vmatprep.subr.mxu0 0.0
      %378 = vmatpush2.msra.mxu0 0.0
      %379 = vmatprep.subr.mxu0 0.0
      %380 = vmatpush2.msra.mxu0 0.0
      %381 = vmatprep.subr.mxu0 0.0
      %382 = vmatpush2.msra.mxu0 0.0
      %383 = vmatprep.subr.mxu0 0.0
      %384 = vmatpush2.msra.mxu0 0.0
      %385 = vmatprep.mubr.f32.mxu0 0.0
      %386 = vmatmul.mubr.f32.gmra.mxu0 %v316
      %v387 = vpop.f32.mrf.mxu0
      %v388 = vadd.f32 0.0, %v387
      %v389 = vpop.f32.mrf.mxu0
      %390 = vmatprep.mubr.f32.mxu0 0.0
      %391 = vmatmul.mubr.f32.gmra.mxu0 %v319
      %v392 = vpop.f32.mrf.mxu0
      %v393 = vadd.f32 0.0, %v392
      %v394 = vpop.f32.mrf.mxu0
      %395 = vdwg.mxu0
      %396 = vst.msk [vmem:[%s123] sm:$0xff] %vm179, %v388
      %397 = vst.msk [vmem:[%s123 + $0x8] sm:$0xff] %vm179, %v393
      %398 = vmatprep.subr.mxu0 0.0
      %399 = vmatpush1.msra.mxu0 0.0
      %400 = vmatprep.subr.mxu0 0.0
      %401 = vmatpush1.msra.mxu0 0.0
      %402 = vmatprep.subr.mxu0 0.0
      %403 = vmatpush1.msra.mxu0 0.0
      %404 = vmatprep.subr.mxu0 0.0
      %405 = vmatpush1.msra.mxu0 0.0
      %406 = vmatprep.subr.mxu0 0.0
      %407 = vmatpush1.msra.mxu0 0.0
      %408 = vmatprep.subr.mxu0 0.0
      %409 = vmatpush1.msra.mxu0 0.0
      %410 = vmatprep.subr.mxu0 0.0
      %411 = vmatpush1.msra.mxu0 0.0
      %412 = vmatprep.subr.mxu0 0.0
      %413 = vmatpush1.msra.mxu0 0.0
      %414 = vmatprep.subr.mxu0 0.0
      %415 = vmatpush1.msra.mxu0 0.0
      %416 = vmatprep.subr.mxu0 0.0
      %417 = vmatpush1.msra.mxu0 0.0
      %418 = vmatprep.subr.mxu0 0.0
      %419 = vmatpush1.msra.mxu0 0.0
      %420 = vmatprep.subr.mxu0 0.0
      %421 = vmatpush1.msra.mxu0 0.0
      %422 = vmatprep.subr.mxu0 0.0
      %423 = vmatpush1.msra.mxu0 0.0
      %424 = vmatprep.subr.mxu0 0.0
      %425 = vmatpush1.msra.mxu0 0.0
      %426 = vmatprep.subr.mxu0 0.0
      %427 = vmatpush1.msra.mxu0 %v292
      %428 = vmatprep.subr.mxu0 0.0
      %429 = vmatpush1.msra.mxu0 %v287
      %430 = vmatprep.subr.mxu0 0.0
      %431 = vmatpush2.msra.mxu0 0.0
      %432 = vmatprep.subr.mxu0 0.0
      %433 = vmatpush2.msra.mxu0 0.0
      %434 = vmatprep.subr.mxu0 0.0
      %435 = vmatpush2.msra.mxu0 0.0
      %436 = vmatprep.subr.mxu0 0.0
      %437 = vmatpush2.msra.mxu0 0.0
      %438 = vmatprep.subr.mxu0 0.0
      %439 = vmatpush2.msra.mxu0 0.0
      %440 = vmatprep.subr.mxu0 0.0
      %441 = vmatpush2.msra.mxu0 0.0
      %442 = vmatprep.subr.mxu0 0.0
      %443 = vmatpush2.msra.mxu0 0.0
      %444 = vmatprep.subr.mxu0 0.0
      %445 = vmatpush2.msra.mxu0 0.0
      %446 = vmatprep.subr.mxu0 0.0
      %447 = vmatpush2.msra.mxu0 0.0
      %448 = vmatprep.subr.mxu0 0.0
      %449 = vmatpush2.msra.mxu0 0.0
      %450 = vmatprep.subr.mxu0 0.0
      %451 = vmatpush2.msra.mxu0 0.0
      %452 = vmatprep.subr.mxu0 0.0
      %453 = vmatpush2.msra.mxu0 0.0
      %454 = vmatprep.subr.mxu0 0.0
      %455 = vmatpush2.msra.mxu0 0.0
      %456 = vmatprep.subr.mxu0 0.0
      %457 = vmatpush2.msra.mxu0 0.0
      %458 = vmatprep.subr.mxu0 0.0
      %459 = vmatpush2.msra.mxu0 0.0
      %460 = vmatprep.subr.mxu0 0.0
      %461 = vmatpush2.msra.mxu0 0.0
      %462 = vmatprep.mubr.f32.mxu0 0.0
      %463 = vmatmul.mubr.f32.gmra.mxu0 %v316
      %v464 = vpop.f32.mrf.mxu0
      %v465 = vadd.f32 0.0, %v464
      %v466 = vpop.f32.mrf.mxu0
      %467 = vmatprep.mubr.f32.mxu0 0.0
      %468 = vmatmul.mubr.f32.gmra.mxu0 %v319
      %v469 = vpop.f32.mrf.mxu0
      %v470 = vadd.f32 0.0, %v469
      %v471 = vpop.f32.mrf.mxu0
      %472 = vdwg.mxu0
      %473 = vst.msk [vmem:[%s123 + $0x10] sm:$0xff] %vm179, %v465
      %474 = vst.msk [vmem:[%s123 + $0x18] sm:$0xff] %vm179, %v470
      %475 = vmatprep.subr.mxu0 0.0
      %476 = vmatpush1.msra.mxu0 0.0
      %477 = vmatprep.subr.mxu0 0.0
      %478 = vmatpush1.msra.mxu0 0.0
      %479 = vmatprep.subr.mxu0 0.0
      %480 = vmatpush1.msra.mxu0 0.0
      %481 = vmatprep.subr.mxu0 0.0
      %482 = vmatpush1.msra.mxu0 0.0
      %483 = vmatprep.subr.mxu0 0.0
      %484 = vmatpush1.msra.mxu0 0.0
      %485 = vmatprep.subr.mxu0 0.0
      %486 = vmatpush1.msra.mxu0 0.0
      %487 = vmatprep.subr.mxu0 0.0
      %488 = vmatpush1.msra.mxu0 0.0
      %489 = vmatprep.subr.mxu0 0.0
      %490 = vmatpush1.msra.mxu0 0.0
      %491 = vmatprep.subr.mxu0 0.0
      %492 = vmatpush1.msra.mxu0 0.0
      %493 = vmatprep.subr.mxu0 0.0
      %494 = vmatpush1.msra.mxu0 0.0
      %495 = vmatprep.subr.mxu0 0.0
      %496 = vmatpush1.msra.mxu0 0.0
      %497 = vmatprep.subr.mxu0 0.0
      %498 = vmatpush1.msra.mxu0 0.0
      %499 = vmatprep.subr.mxu0 0.0
      %500 = vmatpush1.msra.mxu0 0.0
      %501 = vmatprep.subr.mxu0 0.0
      %502 = vmatpush1.msra.mxu0 0.0
      %503 = vmatprep.subr.mxu0 0.0
      %504 = vmatpush1.msra.mxu0 %v302
      %505 = vmatprep.subr.mxu0 0.0
      %506 = vmatpush1.msra.mxu0 %v297
      %507 = vmatprep.subr.mxu0 0.0
      %508 = vmatpush2.msra.mxu0 0.0
      %509 = vmatprep.subr.mxu0 0.0
      %510 = vmatpush2.msra.mxu0 0.0
      %511 = vmatprep.subr.mxu0 0.0
      %512 = vmatpush2.msra.mxu0 0.0
      %513 = vmatprep.subr.mxu0 0.0
      %514 = vmatpush2.msra.mxu0 0.0
      %515 = vmatprep.subr.mxu0 0.0
      %516 = vmatpush2.msra.mxu0 0.0
      %517 = vmatprep.subr.mxu0 0.0
      %518 = vmatpush2.msra.mxu0 0.0
      %519 = vmatprep.subr.mxu0 0.0
      %520 = vmatpush2.msra.mxu0 0.0
      %521 = vmatprep.subr.mxu0 0.0
      %522 = vmatpush2.msra.mxu0 0.0
      %523 = vmatprep.subr.mxu0 0.0
      %524 = vmatpush2.msra.mxu0 0.0
      %525 = vmatprep.subr.mxu0 0.0
      %526 = vmatpush2.msra.mxu0 0.0
      %527 = vmatprep.subr.mxu0 0.0
      %528 = vmatpush2.msra.mxu0 0.0
      %529 = vmatprep.subr.mxu0 0.0
      %530 = vmatpush2.msra.mxu0 0.0
      %531 = vmatprep.subr.mxu0 0.0
      %532 = vmatpush2.msra.mxu0 0.0
      %533 = vmatprep.subr.mxu0 0.0
      %534 = vmatpush2.msra.mxu0 0.0
      %535 = vmatprep.subr.mxu0 0.0
      %536 = vmatpush2.msra.mxu0 0.0
      %537 = vmatprep.subr.mxu0 0.0
      %538 = vmatpush2.msra.mxu0 0.0
      %539 = vmatprep.mubr.f32.mxu0 0.0
      %540 = vmatmul.mubr.f32.gmra.mxu0 %v316
      %v541 = vpop.f32.mrf.mxu0
      %v542 = vadd.f32 0.0, %v541
      %v543 = vpop.f32.mrf.mxu0
      %544 = vmatprep.mubr.f32.mxu0 0.0
      %545 = vmatmul.mubr.f32.gmra.mxu0 %v319
      %v546 = vpop.f32.mrf.mxu0
      %v547 = vadd.f32 0.0, %v546
      %v548 = vpop.f32.mrf.mxu0
      %549 = vdwg.mxu0
      %550 = vst.msk [vmem:[%s123 + $0x20] sm:$0xff] %vm179, %v542
      %551 = vst.msk [vmem:[%s123 + $0x28] sm:$0xff] %vm179, %v547
      %552 = vmatprep.subr.mxu0 0.0
      %553 = vmatpush1.msra.mxu0 0.0
      %554 = vmatprep.subr.mxu0 0.0
      %555 = vmatpush1.msra.mxu0 0.0
      %556 = vmatprep.subr.mxu0 0.0
      %557 = vmatpush1.msra.mxu0 0.0
      %558 = vmatprep.subr.mxu0 0.0
      %559 = vmatpush1.msra.mxu0 0.0
      %560 = vmatprep.subr.mxu0 0.0
      %561 = vmatpush1.msra.mxu0 0.0
      %562 = vmatprep.subr.mxu0 0.0
      %563 = vmatpush1.msra.mxu0 0.0
      %564 = vmatprep.subr.mxu0 0.0
      %565 = vmatpush1.msra.mxu0 0.0
      %566 = vmatprep.subr.mxu0 0.0
      %567 = vmatpush1.msra.mxu0 0.0
      %568 = vmatprep.subr.mxu0 0.0
      %569 = vmatpush1.msra.mxu0 0.0
      %570 = vmatprep.subr.mxu0 0.0
      %571 = vmatpush1.msra.mxu0 0.0
      %572 = vmatprep.subr.mxu0 0.0
      %573 = vmatpush1.msra.mxu0 0.0
      %574 = vmatprep.subr.mxu0 0.0
      %575 = vmatpush1.msra.mxu0 0.0
      %576 = vmatprep.subr.mxu0 0.0
      %577 = vmatpush1.msra.mxu0 0.0
      %578 = vmatprep.subr.mxu0 0.0
      %579 = vmatpush1.msra.mxu0 0.0
      %580 = vmatprep.subr.mxu0 0.0
      %581 = vmatpush1.msra.mxu0 %v312
      %582 = vmatprep.subr.mxu0 0.0
      %583 = vmatpush1.msra.mxu0 %v307
      %584 = vmatprep.subr.mxu0 0.0
      %585 = vmatpush2.msra.mxu0 0.0
      %586 = vmatprep.subr.mxu0 0.0
      %587 = vmatpush2.msra.mxu0 0.0
      %588 = vmatprep.subr.mxu0 0.0
      %589 = vmatpush2.msra.mxu0 0.0
      %590 = vmatprep.subr.mxu0 0.0
      %591 = vmatpush2.msra.mxu0 0.0
      %592 = vmatprep.subr.mxu0 0.0
      %593 = vmatpush2.msra.mxu0 0.0
      %594 = vmatprep.subr.mxu0 0.0
      %595 = vmatpush2.msra.mxu0 0.0
      %596 = vmatprep.subr.mxu0 0.0
      %597 = vmatpush2.msra.mxu0 0.0
      %598 = vmatprep.subr.mxu0 0.0
      %599 = vmatpush2.msra.mxu0 0.0
      %600 = vmatprep.subr.mxu0 0.0
      %601 = vmatpush2.msra.mxu0 0.0
      %602 = vmatprep.subr.mxu0 0.0
      %603 = vmatpush2.msra.mxu0 0.0
      %604 = vmatprep.subr.mxu0 0.0
      %605 = vmatpush2.msra.mxu0 0.0
      %606 = vmatprep.subr.mxu0 0.0
      %607 = vmatpush2.msra.mxu0 0.0
      %608 = vmatprep.subr.mxu0 0.0
      %609 = vmatpush2.msra.mxu0 0.0
      %610 = vmatprep.subr.mxu0 0.0
      %611 = vmatpush2.msra.mxu0 0.0
      %612 = vmatprep.subr.mxu0 0.0
      %613 = vmatpush2.msra.mxu0 0.0
      %614 = vmatprep.subr.mxu0 0.0
      %615 = vmatpush2.msra.mxu0 0.0
      %616 = vmatprep.mubr.f32.mxu0 0.0
      %617 = vmatmul.mubr.f32.gmra.mxu0 %v316
      %v618 = vpop.f32.mrf.mxu0
      %v619 = vadd.f32 0.0, %v618
      %v620 = vpop.f32.mrf.mxu0
      %621 = vmatprep.mubr.f32.mxu0 0.0
      %622 = vmatmul.mubr.f32.gmra.mxu0 %v319
      %v623 = vpop.f32.mrf.mxu0
      %v624 = vadd.f32 0.0, %v623
      %v625 = vpop.f32.mrf.mxu0
      %626 = vdwg.mxu0
      %627 = vst.msk [vmem:[%s123 + $0x30] sm:$0xff] %vm179, %v619
      %628 = vst.msk [vmem:[%s123 + $0x38] sm:$0xff] %vm179, %v624
      %p629 = scmp.lt.s32.totalorder %s19, 1
      %s630 = scalar_select %p629, %s19, 1
      %s631 = smul.addr %s630, 8
      %s632 = smul.addr %s631, 8
      %s633 = scalar_lea.vmem %s2, %s632
      // Predicated region
      $region25: #{tpu_custom_call.1} parent=23 // pred_check
        %p634 = pneg %p63
      $region26: #{tpu_custom_call.1} parent=23 // pred_check_branch
        %636 = sbr.rel (%p634) target = $region28
      $region27: #{tpu_custom_call.1} parent=23 // pred_region
        _
      $region28: #{tpu_custom_call.1} parent=23 // pred_fallthru
        _
    $region24: #{tpu_custom_call.1} parent=5 // pred_fallthru
      _
    %p637 = scmp.le.s32.totalorder 2, %s14
    // Predicated region
    $region29: #{tpu_custom_call.1} parent=5 // pred_check
      %p638 = pneg %p637
    $region30: #{tpu_custom_call.1} parent=5 // pred_check_branch
      %640 = sbr.rel (%p638) target = $region32
    $region31: #{tpu_custom_call.1} parent=5 // pred_region
      %s641 = ssub.s32 %s14, 2
      // Predicated region
      $region33: #{tpu_custom_call.1} parent=31 // pred_check
        %p642 = pneg %p69
      $region34: #{tpu_custom_call.1} parent=31 // pred_check_branch
        %644 = sbr.rel (%p642) target = $region36
      $region35: #{tpu_custom_call.1} parent=31 // pred_region
        %p645 = scmp.lt.s32.totalorder %s20, 1
        %s646 = scalar_select %p645, %s20, 1
        %s647 = smul.addr %s646, 8
        %s648 = smul.addr %s647, 8
        %s649 = scalar_lea.vmem %s2, %s648
      $region36: #{tpu_custom_call.1} parent=31 // pred_fallthru
        _
    $region32: #{tpu_custom_call.1} parent=5 // pred_fallthru
      _
  $region6: #{tpu_custom_call.1} parent=0 // loop_footer
    %s18 = sadd.s32 1, %s14
  $region7: #{tpu_custom_call.1} parent=0 // loop_footer_branch
    %13 = sbr.rel target = $region3
  $region8: #{tpu_custom_call.1} parent=0 // loop_exit
    _

</llo_original>
